<compile_context>
chip_gen: v7x
topology: tpu7x:2x2x1
jax: 0.10.0
libtpu: 0.0.40
codegen_flags: <defaults>
</compile_context>

<pallas_src>
import functools

import jax
import jax.numpy as jnp
from jax import lax
from jax.experimental import pallas as pl
from jax.experimental.pallas import tpu as pltpu


def _softplus(z):
    # numerically stable log(1 + exp(z)) = max(z, 0) + log1p(exp(-|z|))
    return jnp.maximum(z, 0.0) + jnp.log1p(jnp.exp(-jnp.abs(z)))


def _masked_total(x2d, keep_rows):
    """Total sum of a 2-D tile, excluding padded rows.

    keep_rows is None (no padding) or a (rows, 1) bool mask.  The mask is
    applied to per-row partial sums, so the full-width `where` is avoided and
    any garbage (NaN/inf) in padded rows is selected away, never multiplied.
    """
    if keep_rows is None:
        return jnp.sum(x2d)
    row_sums = jnp.sum(x2d, axis=-1, keepdims=True)          # (rows, 1)
    return jnp.sum(jnp.where(keep_rows, row_sums, 0.0))


def _culoss_kernel(conf_ref, lab_ref, unlab_ref, out_ref, acc_ref, *,
                   beta, up, non,
                   n_lab_rows, n_unlab_rows,
                   lab_tile_rows, unlab_tile_rows,
                   tiles_lab, tiles_unlab,
                   n_lab_elems, n_unlab_elems,
                   mask_lab, mask_unlab):
    """Tiled reduction over row tiles of (conf, labeled) and unlabeled.

    Grid: one "arbitrary" axis of length max(tiles_lab, tiles_unlab).
    acc_ref (SMEM, f32[4]) accumulates:
      [0] sum softplus(labeled)   [1] sum labeled
      [2] sum conf                [3] sum softplus(+/- unlabeled)
    The final grid step turns the four sums into the CULoss objective.
    """
    i = pl.program_id(0)

    @pl.when(i == 0)
    def _init():
        acc_ref[0] = jnp.float32(0.0)
        acc_ref[1] = jnp.float32(0.0)
        acc_ref[2] = jnp.float32(0.0)
        acc_ref[3] = jnp.float32(0.0)

    # ---- labeled / conf tile (skipped once past the labeled extent) --------
    @pl.when(i < tiles_lab)
    def _labeled_tile():
        lab = lab_ref[...].astype(jnp.float32)
        conf = conf_ref[...].astype(jnp.float32)
        sp_lab = _softplus(lab)          # softplus(x); softplus(-x) = sp_lab - x
        keep = None
        if mask_lab:                     # static: only when the last tile is ragged
            row = lax.broadcasted_iota(jnp.int32, (lab.shape[0], 1), 0)
            keep = (i * lab_tile_rows + row) < n_lab_rows
        acc_ref[0] = acc_ref[0] + _masked_total(sp_lab, keep)
        acc_ref[1] = acc_ref[1] + _masked_total(lab, keep)
        acc_ref[2] = acc_ref[2] + _masked_total(conf, keep)

    # ---- unlabeled tile -----------------------------------------------------
    @pl.when(i < tiles_unlab)
    def _unlabeled_tile():
        unlab = unlab_ref[...].astype(jnp.float32)
        z = -unlab if up else unlab      # loss(unlab, +1) vs loss(unlab, -1)
        sp_u = _softplus(z)
        keep = None
        if mask_unlab:
            row = lax.broadcasted_iota(jnp.int32, (unlab.shape[0], 1), 0)
            keep = (i * unlab_tile_rows + row) < n_unlab_rows
        acc_ref[3] = acc_ref[3] + _masked_total(sp_u, keep)

    # ---- finalize: pure scalar algebra on the four sums ---------------------
    @pl.when(i == pl.num_programs(0) - 1)
    def _finalize():
        inv_lab = jnp.float32(1.0 / float(n_lab_elems))
        inv_unlab = jnp.float32(1.0 / float(n_unlab_elems))
        y_conf_neg = acc_ref[0] * inv_lab                  # mean softplus(lab)
        y_conf_pos = y_conf_neg - acc_ref[1] * inv_lab     # mean softplus(-lab)
        m_conf = acc_ref[2] * inv_lab                      # mean(conf)
        unlabeled_risk = jnp.float32(beta) * (acc_ref[3] * inv_unlab)
        if up:
            neg_risk = (1.0 - m_conf) * y_conf_neg
            pos_risk = (m_conf - beta) * y_conf_pos + unlabeled_risk
        else:
            pos_risk = m_conf * y_conf_pos
            neg_risk = (1.0 - beta - m_conf) * y_conf_neg + unlabeled_risk
        if non:
            objective = jnp.maximum(neg_risk, 0.0) + jnp.maximum(pos_risk, 0.0)
        else:
            objective = neg_risk + pos_risk
        out_ref[0, 0] = objective


def _as_2d(x):
    if x.ndim == 2:
        return x
    if x.ndim < 2:
        return x.reshape(1, -1)
    return x.reshape(-1, x.shape[-1])


def _tile_rows(n_rows, n_cols, budget_bytes):
    """Rows per block: whole array if it fits the per-buffer budget, otherwise
    the largest multiple of 8 (capped at 512) that fits.  Either choice obeys
    the TPU (8, 128) block rule (full dim, or a multiple of 8)."""
    if n_rows * n_cols * 4 <= budget_bytes:
        return int(n_rows)
    rows = (budget_bytes // (n_cols * 4)) // 8 * 8
    return int(max(8, min(512, rows, n_rows)))


def culoss(conf, labeled, unlabeled, *, beta, up, non=False,
           tile_budget_bytes=2 << 20):
    """CULoss forward as a single tiled Pallas reduction kernel.

    conf must share labeled's shape (per-labeled-sample confidence);
    unlabeled may have a different number of rows / features.
    """
    assert conf.shape == labeled.shape, "conf is per-labeled-sample confidence"

    conf2 = _as_2d(conf)
    lab2 = _as_2d(labeled)
    unlab2 = _as_2d(unlabeled)

    n_lab, d_lab = lab2.shape
    n_unlab, d_unlab = unlab2.shape

    t_lab = _tile_rows(n_lab, d_lab, tile_budget_bytes)
    t_unlab = _tile_rows(n_unlab, d_unlab, tile_budget_bytes)
    tiles_lab = pl.cdiv(n_lab, t_lab)
    tiles_unlab = pl.cdiv(n_unlab, t_unlab)
    grid = (max(tiles_lab, tiles_unlab),)

    # Clamp block indices so the input with fewer tiles never DMAs out of
    # bounds while the other still has tiles left; because the clamped index
    # stops changing, the pipeline keeps the block resident (no extra DMA) and
    # the kernel's pl.when gates out its contribution.
    lab_map = lambda i: (jnp.minimum(i, tiles_lab - 1), 0)
    unlab_map = lambda i: (jnp.minimum(i, tiles_unlab - 1), 0)

    kernel = functools.partial(
        _culoss_kernel,
        beta=float(beta), up=bool(up), non=bool(non),
        n_lab_rows=n_lab, n_unlab_rows=n_unlab,
        lab_tile_rows=t_lab, unlab_tile_rows=t_unlab,
        tiles_lab=tiles_lab, tiles_unlab=tiles_unlab,
        n_lab_elems=n_lab * d_lab, n_unlab_elems=n_unlab * d_unlab,
        mask_lab=(tiles_lab * t_lab != n_lab),
        mask_unlab=(tiles_unlab * t_unlab != n_unlab),
    )

    # TODO(synk): shard the reduction across v7x's two TensorCores via
    # per-core partial sums (needs a per-core partial output + combine).
    out = pl.pallas_call(
        kernel,
        out_shape=jax.ShapeDtypeStruct((1, 1), jnp.float32),
        grid=grid,
        in_specs=[
            pl.BlockSpec((t_lab, d_lab), lab_map),        # conf (same tiling as labeled)
            pl.BlockSpec((t_lab, d_lab), lab_map),        # labeled
            pl.BlockSpec((t_unlab, d_unlab), unlab_map),  # unlabeled
        ],
        out_specs=pl.BlockSpec((1, 1), lambda i: (0, 0),
                               memory_space=pltpu.MemorySpace.SMEM),
        scratch_shapes=[pltpu.SMEM((4,), jnp.float32)],
        compiler_params=pltpu.CompilerParams(
            dimension_semantics=("arbitrary",)),
    )(conf2, lab2, unlab2)
    return out[0, 0]


def culoss_ref(conf, labeled, unlabeled, *, beta, up, non=False):
    """Pure-JAX reference mirroring the PyTorch forward."""
    sp = jax.nn.softplus
    y_conf_pos = jnp.mean(sp(-labeled))
    y_conf_neg = jnp.mean(sp(labeled))
    if up:
        unlabeled_risk = beta * jnp.mean(sp(-unlabeled))
        neg_risk = jnp.mean((1.0 - conf) * y_conf_neg)
        pos_risk = jnp.mean((conf - beta) * y_conf_pos) + unlabeled_risk
    else:
        unlabeled_risk = beta * jnp.mean(sp(unlabeled))
        pos_risk = jnp.mean(conf * y_conf_pos)
        neg_risk = jnp.mean((1.0 - beta - conf) * y_conf_neg) + unlabeled_risk
    if non:
        return jnp.maximum(neg_risk, 0.0) + jnp.maximum(pos_risk, 0.0)
    return neg_risk + pos_risk


if __name__ == "__main__":
    key = jax.random.PRNGKey(0)
    k_conf, k_lab, k_unlab = jax.random.split(key, 3)

    # Small shapes consistent with the module: conf/labeled share a shape,
    # unlabeled may differ.
    conf = jax.random.uniform(k_conf, (16, 128), dtype=jnp.float32)        # in [0, 1]
    labeled = jax.random.normal(k_lab, (16, 128), dtype=jnp.float32)       # logits
    unlabeled = jax.random.normal(k_unlab, (32, 128), dtype=jnp.float32)   # logits

    beta = 0.1
    # __init__-time decision in the PyTorch module: static flag; the host
    # sync / per-flag retrace here is intentional and mirrors that semantics.
    up = bool(jax.device_get(jnp.mean(conf)) > 0.5)

    ok = True
    for non in (False, True):
        out = jax.block_until_ready(
            culoss(conf, labeled, unlabeled, beta=beta, up=up, non=non))
        ref = culoss_ref(conf, labeled, unlabeled, beta=beta, up=up, non=non)
        good = bool(jnp.allclose(out, ref, rtol=1e-4, atol=1e-6))
        assert good, f"mismatch (non={non}): kernel={out} ref={ref}"
        ok &= good

    # Exercise the tiled / ragged-masked accumulator path (different tile
    # counts for labeled vs unlabeled) by shrinking the per-block budget.
    conf2 = jax.random.uniform(k_conf, (40, 128), dtype=jnp.float32)
    lab2 = jax.random.normal(k_lab, (40, 128), dtype=jnp.float32)
    unlab2 = jax.random.normal(k_unlab, (100, 128), dtype=jnp.float32)
    for up2 in (False, True):
        out = jax.block_until_ready(
            culoss(conf2, lab2, unlab2, beta=beta, up=up2, non=False,
                   tile_budget_bytes=8 * 1024))
        ref = culoss_ref(conf2, lab2, unlab2, beta=beta, up=up2, non=False)
        good = bool(jnp.allclose(out, ref, rtol=1e-4, atol=1e-6))
        assert good, f"mismatch tiled (up={up2}): kernel={out} ref={ref}"
        ok &= good

    if ok:
        print("KERNEL_OK")
</pallas_src>

<mosaic_0001>
module attributes {stable_mosaic.version = 11 : i64} {
  func.func @_culoss_kernel(%arg0: i32, %arg1: memref<16x128xf32, #tpu.memory_space<vmem>>, %arg2: memref<16x128xf32, #tpu.memory_space<vmem>>, %arg3: memref<32x128xf32, #tpu.memory_space<vmem>>, %arg4: memref<1x1xf32, #tpu.memory_space<smem>>, %arg5: memref<4xf32, #tpu.memory_space<smem>>) attributes {dimension_semantics = [#tpu.dimension_semantics<arbitrary>], iteration_bounds = array<i64: 1>, scalar_prefetch = 0 : i64, scratch_operands = 1 : i64, tpu.core_type = #tpu.core_type<tc>, window_params = [{transform_indices = @transform_0, window_bounds = array<i64: 16, 128>}, {transform_indices = @transform_1, window_bounds = array<i64: 16, 128>}, {transform_indices = @transform_2, window_bounds = array<i64: 32, 128>}, {transform_indices = @transform_3, window_bounds = array<i64: 1, 1>}]} {
    %c0_i32 = arith.constant 0 : i32
    %0 = arith.cmpi eq, %arg0, %c0_i32 : i32
    %1 = arith.extui %0 : i1 to i32
    %c0_i32_0 = arith.constant 0 : i32
    %2 = arith.cmpi ne, %1, %c0_i32_0 : i32
    scf.if %2 {
      %cst = arith.constant 0.000000e+00 : f32
      %c0 = arith.constant 0 : index
      %12 = memref.load %arg5[%c0] : memref<4xf32, #tpu.memory_space<smem>>
      memref.store %cst, %arg5[%c0] : memref<4xf32, #tpu.memory_space<smem>>
      %cst_6 = arith.constant 0.000000e+00 : f32
      %c1 = arith.constant 1 : index
      %13 = memref.load %arg5[%c1] : memref<4xf32, #tpu.memory_space<smem>>
      memref.store %cst_6, %arg5[%c1] : memref<4xf32, #tpu.memory_space<smem>>
      %cst_7 = arith.constant 0.000000e+00 : f32
      %c2 = arith.constant 2 : index
      %14 = memref.load %arg5[%c2] : memref<4xf32, #tpu.memory_space<smem>>
      memref.store %cst_7, %arg5[%c2] : memref<4xf32, #tpu.memory_space<smem>>
      %cst_8 = arith.constant 0.000000e+00 : f32
      %c3 = arith.constant 3 : index
      %15 = memref.load %arg5[%c3] : memref<4xf32, #tpu.memory_space<smem>>
      memref.store %cst_8, %arg5[%c3] : memref<4xf32, #tpu.memory_space<smem>>
    } else {
    }
    %c1_i32 = arith.constant 1 : i32
    %3 = arith.cmpi slt, %arg0, %c1_i32 : i32
    %4 = arith.extui %3 : i1 to i32
    %c0_i32_1 = arith.constant 0 : i32
    %5 = arith.cmpi ne, %4, %c0_i32_1 : i32
    scf.if %5 {
      %c0 = arith.constant 0 : index
      %c0_6 = arith.constant 0 : index
      %12 = vector.load %arg2[%c0, %c0_6] : memref<16x128xf32, #tpu.memory_space<vmem>>, vector<16x128xf32>
      %c0_7 = arith.constant 0 : index
      %c0_8 = arith.constant 0 : index
      %13 = vector.load %arg1[%c0_7, %c0_8] : memref<16x128xf32, #tpu.memory_space<vmem>>, vector<16x128xf32>
      %cst = arith.constant 0.000000e+00 : f32
      %14 = vector.broadcast %cst : f32 to vector<16x128xf32>
      %15 = arith.maximumf %12, %14 : vector<16x128xf32>
      %16 = math.absf %12 : vector<16x128xf32>
      %cst_9 = arith.constant 0.000000e+00 : f32
      %17 = vector.broadcast %cst_9 : f32 to vector<16x128xf32>
      %18 = arith.subf %17, %16 : vector<16x128xf32>
      %19 = math.exp %18 : vector<16x128xf32>
      %20 = math.log1p %19 : vector<16x128xf32>
      %21 = arith.addf %15, %20 : vector<16x128xf32>
      %c0_10 = arith.constant 0 : index
      %22 = memref.load %arg5[%c0_10] : memref<4xf32, #tpu.memory_space<smem>>
      %23 = vector.shape_cast %21 : vector<16x128xf32> to vector<1x16x128xf32>
      %cst_11 = arith.constant dense<0.000000e+00> : vector<1xf32>
      %24 = vector.multi_reduction <add>, %23, %cst_11 [1, 2] : vector<1x16x128xf32> to vector<1xf32>
      %25 = vector.shape_cast %24 : vector<1xf32> to vector<1x1x1xf32>
      %26 = vector.extract %25[0, 0, 0] : f32 from vector<1x1x1xf32>
      %27 = arith.addf %22, %26 : f32
      %c0_12 = arith.constant 0 : index
      %28 = memref.load %arg5[%c0_12] : memref<4xf32, #tpu.memory_space<smem>>
      memref.store %27, %arg5[%c0_12] : memref<4xf32, #tpu.memory_space<smem>>
      %c1 = arith.constant 1 : index
      %29 = memref.load %arg5[%c1] : memref<4xf32, #tpu.memory_space<smem>>
      %30 = vector.shape_cast %12 : vector<16x128xf32> to vector<1x16x128xf32>
      %cst_13 = arith.constant dense<0.000000e+00> : vector<1xf32>
      %31 = vector.multi_reduction <add>, %30, %cst_13 [1, 2] : vector<1x16x128xf32> to vector<1xf32>
      %32 = vector.shape_cast %31 : vector<1xf32> to vector<1x1x1xf32>
      %33 = vector.extract %32[0, 0, 0] : f32 from vector<1x1x1xf32>
      %34 = arith.addf %29, %33 : f32
      %c1_14 = arith.constant 1 : index
      %35 = memref.load %arg5[%c1_14] : memref<4xf32, #tpu.memory_space<smem>>
      memref.store %34, %arg5[%c1_14] : memref<4xf32, #tpu.memory_space<smem>>
      %c2 = arith.constant 2 : index
      %36 = memref.load %arg5[%c2] : memref<4xf32, #tpu.memory_space<smem>>
      %37 = vector.shape_cast %13 : vector<16x128xf32> to vector<1x16x128xf32>
      %cst_15 = arith.constant dense<0.000000e+00> : vector<1xf32>
      %38 = vector.multi_reduction <add>, %37, %cst_15 [1, 2] : vector<1x16x128xf32> to vector<1xf32>
      %39 = vector.shape_cast %38 : vector<1xf32> to vector<1x1x1xf32>
      %40 = vector.extract %39[0, 0, 0] : f32 from vector<1x1x1xf32>
      %41 = arith.addf %36, %40 : f32
      %c2_16 = arith.constant 2 : index
      %42 = memref.load %arg5[%c2_16] : memref<4xf32, #tpu.memory_space<smem>>
      memref.store %41, %arg5[%c2_16] : memref<4xf32, #tpu.memory_space<smem>>
    } else {
    }
    %c1_i32_2 = arith.constant 1 : i32
    %6 = arith.cmpi slt, %arg0, %c1_i32_2 : i32
    %7 = arith.extui %6 : i1 to i32
    %c0_i32_3 = arith.constant 0 : i32
    %8 = arith.cmpi ne, %7, %c0_i32_3 : i32
    scf.if %8 {
      %c0 = arith.constant 0 : index
      %c0_6 = arith.constant 0 : index
      %12 = vector.load %arg3[%c0, %c0_6] : memref<32x128xf32, #tpu.memory_space<vmem>>, vector<32x128xf32>
      %cst = arith.constant 0.000000e+00 : f32
      %13 = vector.broadcast %cst : f32 to vector<32x128xf32>
      %14 = arith.maximumf %12, %13 : vector<32x128xf32>
      %15 = math.absf %12 : vector<32x128xf32>
      %cst_7 = arith.constant 0.000000e+00 : f32
      %16 = vector.broadcast %cst_7 : f32 to vector<32x128xf32>
      %17 = arith.subf %16, %15 : vector<32x128xf32>
      %18 = math.exp %17 : vector<32x128xf32>
      %19 = math.log1p %18 : vector<32x128xf32>
      %20 = arith.addf %14, %19 : vector<32x128xf32>
      %c3 = arith.constant 3 : index
      %21 = memref.load %arg5[%c3] : memref<4xf32, #tpu.memory_space<smem>>
      %22 = vector.shape_cast %20 : vector<32x128xf32> to vector<1x32x128xf32>
      %cst_8 = arith.constant dense<0.000000e+00> : vector<1xf32>
      %23 = vector.multi_reduction <add>, %22, %cst_8 [1, 2] : vector<1x32x128xf32> to vector<1xf32>
      %24 = vector.shape_cast %23 : vector<1xf32> to vector<1x1x1xf32>
      %25 = vector.extract %24[0, 0, 0] : f32 from vector<1x1x1xf32>
      %26 = arith.addf %21, %25 : f32
      %c3_9 = arith.constant 3 : index
      %27 = memref.load %arg5[%c3_9] : memref<4xf32, #tpu.memory_space<smem>>
      memref.store %26, %arg5[%c3_9] : memref<4xf32, #tpu.memory_space<smem>>
    } else {
    }
    %c0_i32_4 = arith.constant 0 : i32
    %9 = arith.cmpi eq, %arg0, %c0_i32_4 : i32
    %10 = arith.extui %9 : i1 to i32
    %c0_i32_5 = arith.constant 0 : i32
    %11 = arith.cmpi ne, %10, %c0_i32_5 : i32
    scf.if %11 {
      %c0 = arith.constant 0 : index
      %12 = memref.load %arg5[%c0] : memref<4xf32, #tpu.memory_space<smem>>
      %cst = arith.constant 4.8828125E-4 : f32
      %13 = arith.mulf %12, %cst : f32
      %c1 = arith.constant 1 : index
      %14 = memref.load %arg5[%c1] : memref<4xf32, #tpu.memory_space<smem>>
      %cst_6 = arith.constant 4.8828125E-4 : f32
      %15 = arith.mulf %14, %cst_6 : f32
      %16 = arith.subf %13, %15 : f32
      %c2 = arith.constant 2 : index
      %17 = memref.load %arg5[%c2] : memref<4xf32, #tpu.memory_space<smem>>
      %cst_7 = arith.constant 4.8828125E-4 : f32
      %18 = arith.mulf %17, %cst_7 : f32
      %c3 = arith.constant 3 : index
      %19 = memref.load %arg5[%c3] : memref<4xf32, #tpu.memory_space<smem>>
      %cst_8 = arith.constant 2.44140625E-4 : f32
      %20 = arith.mulf %19, %cst_8 : f32
      %cst_9 = arith.constant 1.000000e-01 : f32
      %21 = arith.mulf %cst_9, %20 : f32
      %22 = arith.mulf %18, %16 : f32
      %cst_10 = arith.constant 0.899999976 : f32
      %23 = arith.subf %cst_10, %18 : f32
      %24 = arith.mulf %23, %13 : f32
      %25 = arith.addf %24, %21 : f32
      %26 = arith.addf %25, %22 : f32
      %c0_11 = arith.constant 0 : index
      %c0_12 = arith.constant 0 : index
      %27 = memref.load %arg4[%c0_11, %c0_12] : memref<1x1xf32, #tpu.memory_space<smem>>
      memref.store %26, %arg4[%c0_11, %c0_12] : memref<1x1xf32, #tpu.memory_space<smem>>
    } else {
    }
    return
  }
  func.func @transform_0(%arg0: i32) -> (i32, i32) {
    %c0_i32 = arith.constant 0 : i32
    %0 = arith.minsi %arg0, %c0_i32 : i32
    %c0_i32_0 = arith.constant 0 : i32
    %c0_i32_1 = arith.constant 0 : i32
    return %0, %c0_i32_0 : i32, i32
  }
  func.func @transform_1(%arg0: i32) -> (i32, i32) {
    %c0_i32 = arith.constant 0 : i32
    %0 = arith.minsi %arg0, %c0_i32 : i32
    %c0_i32_0 = arith.constant 0 : i32
    %c0_i32_1 = arith.constant 0 : i32
    return %0, %c0_i32_0 : i32, i32
  }
  func.func @transform_2(%arg0: i32) -> (i32, i32) {
    %c0_i32 = arith.constant 0 : i32
    %0 = arith.minsi %arg0, %c0_i32 : i32
    %c0_i32_0 = arith.constant 0 : i32
    %c0_i32_1 = arith.constant 0 : i32
    return %0, %c0_i32_0 : i32, i32
  }
  func.func @transform_3(%arg0: i32) -> (i32, i32) {
    %c0_i32 = arith.constant 0 : i32
    %c0_i32_0 = arith.constant 0 : i32
    %c0_i32_1 = arith.constant 0 : i32
    return %c0_i32, %c0_i32_0 : i32, i32
  }
}

</mosaic_0001>

<llo_original>
// kernel: tpu_custom_call.1
$region0: #{tpu_custom_call.1}
  #allocation0 [shape = 'u32[]', space=smem, size = 0x4, offset = 0x4, fixed_abs, tag = 'smem constant byte address 0x4 - core index']
  #allocation1 [shape = 'u32[144,128]{1,0:T(1,128)}', space=vmem, size = 0x12000, scoped, tag = 'internal scratch']
  #allocation2 [shape = 'f32[4]{0:T(128)}', space=smem, size = 0x200, scoped, tag = 'scratch operand']
  %s0 = inlined_call_operand.hbm [shape: f32[16,128], index: 0, kind: input, shape index: {}]
  %s1 = inlined_call_operand.hbm [shape: f32[16,128], index: 1, kind: input, shape index: {}]
  %s2 = inlined_call_operand.hbm [shape: f32[32,128], index: 2, kind: input, shape index: {}]
  %s3 = inlined_call_operand.hbm [shape: f32[1,1], index: 3, kind: output, shape index: {}]
  %s4 = sld [smem:[#allocation0]]
  $region46: #{tpu_custom_call.1} parent=0
    _
  %s6 = ssub.s32 1, %s4
  %s7 = scalar_select 0, %s6, %s4
  $region1: #{tpu_custom_call.1} parent=0
    #allocation3 [shape = 'u8[8192]{0}', space=vmem, size = 0x2000, scoped, tag = 'input window, operand 0, single buffered']
    #allocation4 [shape = 's32[1]{0}', space=sflag, size = 0x4, scoped, tag = 'scoped memory for tpu_custom_call.1']
    #allocation5 [shape = 's32[1]{0}', space=sflag, size = 0x4, scoped, tag = 'scoped memory for tpu_custom_call.1']
    #allocation6 [shape = 'u8[8192]{0}', space=vmem, size = 0x2000, scoped, tag = 'input window, operand 1, single buffered']
    #allocation7 [shape = 's32[1]{0}', space=sflag, size = 0x4, scoped, tag = 'scoped memory for tpu_custom_call.1']
    #allocation8 [shape = 'u8[16384]{0}', space=vmem, size = 0x4000, scoped, tag = 'input window, operand 2, single buffered']
    #allocation9 [shape = 'u8[512]{0}', space=smem, size = 0x200, scoped, tag = 'output window, operand 0, single buffered']
    %8 = vsyncpa [#allocation4], 0
    %9 = vsyncpa [#allocation7], 0
    %10 = vsyncpa [#allocation5], 0
    // Predicated region
    $region2: #{tpu_custom_call.1} parent=1 // pred_check
      _
    $region3: #{tpu_custom_call.1} parent=1 // pred_check_branch
      %12 = sbr.rel (0) target = $region5
    $region4: #{tpu_custom_call.1} parent=1 // pred_region
      %s14 = ssub.s32 256, 256
      %15 = vsyncadd [#allocation4], %s14
      %s16 = sshll.u32 [#allocation3], 4
      %s17 = int_to_ptr.vmem [resolvable:$true] %s16
      %22 = dma.hbm_to_vmem [thread:$0]  %s0, 256, %s17, [#allocation4], 128, 128, 8
    $region5: #{tpu_custom_call.1} parent=1 // pred_fallthru
      _
    // Predicated region
    $region6: #{tpu_custom_call.1} parent=1 // pred_check
      _
    $region7: #{tpu_custom_call.1} parent=1 // pred_check_branch
      %24 = sbr.rel (0) target = $region9
    $region8: #{tpu_custom_call.1} parent=1 // pred_region
      %s26 = ssub.s32 256, 256
      %27 = vsyncadd [#allocation7], %s26
      %s28 = sshll.u32 [#allocation6], 4
      %s29 = int_to_ptr.vmem [resolvable:$true] %s28
      %34 = dma.hbm_to_vmem [thread:$0]  %s1, 256, %s29, [#allocation7], 128, 128, 8
    $region9: #{tpu_custom_call.1} parent=1 // pred_fallthru
      _
    // Predicated region
    $region10: #{tpu_custom_call.1} parent=1 // pred_check
      _
    $region11: #{tpu_custom_call.1} parent=1 // pred_check_branch
      %36 = sbr.rel (0) target = $region13
    $region12: #{tpu_custom_call.1} parent=1 // pred_region
      %s38 = ssub.s32 512, 512
      %39 = vsyncadd [#allocation7], %s38
      %s40 = sshll.u32 [#allocation8], 4
      %s41 = int_to_ptr.vmem [resolvable:$true] %s40
      %46 = dma.hbm_to_vmem [thread:$0]  %s2, 512, %s41, [#allocation7], 128, 128, 8
    $region13: #{tpu_custom_call.1} parent=1 // pred_fallthru
      _
    // Predicated region
    $region14: #{tpu_custom_call.1} parent=1 // pred_check
      _
    $region15: #{tpu_custom_call.1} parent=1 // pred_check_branch
      %48 = sbr.rel (0) target = $region17
    $region16: #{tpu_custom_call.1} parent=1 // pred_region
      %49 = dma.done [#allocation4], 256
    $region17: #{tpu_custom_call.1} parent=1 // pred_fallthru
      _
    // Predicated region
    $region18: #{tpu_custom_call.1} parent=1 // pred_check
      _
    $region19: #{tpu_custom_call.1} parent=1 // pred_check_branch
      %51 = sbr.rel (0) target = $region21
    $region20: #{tpu_custom_call.1} parent=1 // pred_region
      %52 = dma.done [#allocation7], 256
    $region21: #{tpu_custom_call.1} parent=1 // pred_fallthru
      _
    // Predicated region
    $region22: #{tpu_custom_call.1} parent=1 // pred_check
      _
    $region23: #{tpu_custom_call.1} parent=1 // pred_check_branch
      %54 = sbr.rel (0) target = $region25
    $region24: #{tpu_custom_call.1} parent=1 // pred_region
      %55 = dma.done [#allocation7], 512
    $region25: #{tpu_custom_call.1} parent=1 // pred_fallthru
      _
    %p56 = scmp.eq.s32.totalorder 0, 0
    // Predicated region
    $region26: #{tpu_custom_call.1} parent=1 // pred_check
      %p57 = pneg %p56
    $region27: #{tpu_custom_call.1} parent=1 // pred_check_branch
      %59 = sbr.rel (%p57) target = $region29
    $region28: #{tpu_custom_call.1} parent=1 // pred_region
      %s60 = scalar_lea.smem [#allocation2], 0
      %61 = sst [smem:[%s60]] 0.0
      %s62 = scalar_lea.smem [#allocation2], 1
      %63 = sst [smem:[%s62]] 0.0
      %s64 = scalar_lea.smem [#allocation2], 2
      %65 = sst [smem:[%s64]] 0.0
      %s66 = scalar_lea.smem [#allocation2], 3
      %67 = sst [smem:[%s66]] 0.0
    $region29: #{tpu_custom_call.1} parent=1 // pred_fallthru
      _
    %p68 = scmp.lt.s32.totalorder 0, 1
    // Predicated region
    $region30: #{tpu_custom_call.1} parent=1 // pred_check
      %p69 = pneg %p68
    $region31: #{tpu_custom_call.1} parent=1 // pred_check_branch
      %71 = sbr.rel (%p69) target = $region33
    $region32: #{tpu_custom_call.1} parent=1 // pred_region
      %v72 = vld [vmem:[#allocation6] sm:$0xff]
      %v73 = vld [vmem:[#allocation6 + $0x8] sm:$0xff]
      %v74 = vld [vmem:[#allocation3] sm:$0xff]
      %v75 = vld [vmem:[#allocation3 + $0x8] sm:$0xff]
      %v76 = vmax.f32 %v72, 0.0
      %v77 = vmax.f32 %v73, 0.0
      %v78 = vand.u32 2147483647, %v72
      %v79 = vand.u32 2147483647, %v73
      %v80 = vsub.f32 0.0, %v78
      %v81 = vsub.f32 0.0, %v79
      %v82 = vmul.f32 %v80, 1.442695
      %v83 = vpow.pop %v82
      %v84 = vmul.f32 %v81, 1.442695
      %v85 = vpow.pop %v84
      %v86 = vadd.f32 %v83, 1.0
      %v87 = vlog2.pop %v86
      %v88 = vmul.f32 %v87, 0.6931472
      %v89 = vmul.f32 -0.5, %v83
      %v90 = vadd.f32 %v89, 1.0
      %v91 = vmul.f32 %v90, %v83
      %v92 = vand.u32 2147483647, %v83
      %vm93 = vcmp.lt.f32.partialorder %v92, 0.0004427343
      %v94 = vsel %vm93, %v91, %v88
      %v95 = vadd.f32 %v85, 1.0
      %v96 = vlog2.pop %v95
      %v97 = vmul.f32 %v96, 0.6931472
      %v98 = vmul.f32 -0.5, %v85
      %v99 = vadd.f32 %v98, 1.0
      %v100 = vmul.f32 %v99, %v85
      %v101 = vand.u32 2147483647, %v85
      %vm102 = vcmp.lt.f32.partialorder %v101, 0.0004427343
      %v103 = vsel %vm102, %v100, %v97
      %v104 = vadd.f32 %v76, %v94
      %v105 = vadd.f32 %v77, %v103
      %s106 = sld [smem:[#allocation2]]
      %v107 = vadd.f32 %v104, %v105
      %108 = vadd.xlane.f32.xlu0 %v107
      %v109 = vpop.xlane.xlu0 %108
      %v110 = vrot.slane %v109, 4
      %v111 = vadd.f32 %v109, %v110
      %v112 = vrot.slane %v111, 2
      %v113 = vadd.f32 %v111, %v112
      %v114 = vrot.slane %v113, 1
      %v115 = vadd.f32 %v113, %v114
      %s116 = vtos %v115
      %s117 = sadd.f32 %s106, %s116
      %s118 = scalar_lea.smem [#allocation2], 0
      %119 = sst [smem:[%s118]] %s117
      %s120 = sld [smem:[#allocation2 + $0x1]]
      %v121 = vadd.f32 %v72, %v73
      %122 = vadd.xlane.f32.xlu0 %v121
      %v123 = vpop.xlane.xlu0 %122
      %v124 = vrot.slane %v123, 4
      %v125 = vadd.f32 %v123, %v124
      %v126 = vrot.slane %v125, 2
      %v127 = vadd.f32 %v125, %v126
      %v128 = vrot.slane %v127, 1
      %v129 = vadd.f32 %v127, %v128
      %s130 = vtos %v129
      %s131 = sadd.f32 %s120, %s130
      %s132 = scalar_lea.smem [#allocation2], 1
      %133 = sst [smem:[%s132]] %s131
      %s134 = sld [smem:[#allocation2 + $0x2]]
      %v135 = vadd.f32 %v74, %v75
      %136 = vadd.xlane.f32.xlu0 %v135
      %v137 = vpop.xlane.xlu0 %136
      %v138 = vrot.slane %v137, 4
      %v139 = vadd.f32 %v137, %v138
      %v140 = vrot.slane %v139, 2
      %v141 = vadd.f32 %v139, %v140
      %v142 = vrot.slane %v141, 1
      %v143 = vadd.f32 %v141, %v142
      %s144 = vtos %v143
      %s145 = sadd.f32 %s134, %s144
      %s146 = scalar_lea.smem [#allocation2], 2
      %147 = sst [smem:[%s146]] %s145
      %v148 = vld [vmem:[#allocation8] sm:$0xff]
      %v149 = vld [vmem:[#allocation8 + $0x8] sm:$0xff]
      %v150 = vld [vmem:[#allocation8 + $0x10] sm:$0xff]
      %v151 = vld [vmem:[#allocation8 + $0x18] sm:$0xff]
      %v152 = vmax.f32 %v148, 0.0
      %v153 = vmax.f32 %v149, 0.0
      %v154 = vmax.f32 %v150, 0.0
      %v155 = vmax.f32 %v151, 0.0
      %v156 = vand.u32 2147483647, %v148
      %v157 = vand.u32 2147483647, %v149
      %v158 = vand.u32 2147483647, %v150
      %v159 = vand.u32 2147483647, %v151
      %v160 = vsub.f32 0.0, %v156
      %v161 = vsub.f32 0.0, %v157
      %v162 = vsub.f32 0.0, %v158
      %v163 = vsub.f32 0.0, %v159
      %v164 = vmul.f32 %v160, 1.442695
      %v165 = vpow.pop %v164
      %v166 = vmul.f32 %v161, 1.442695
      %v167 = vpow.pop %v166
      %v168 = vmul.f32 %v162, 1.442695
      %v169 = vpow.pop %v168
      %v170 = vmul.f32 %v163, 1.442695
      %v171 = vpow.pop %v170
      %v172 = vadd.f32 %v165, 1.0
      %v173 = vlog2.pop %v172
      %v174 = vmul.f32 %v173, 0.6931472
      %v175 = vmul.f32 -0.5, %v165
      %v176 = vadd.f32 %v175, 1.0
      %v177 = vmul.f32 %v176, %v165
      %v178 = vand.u32 2147483647, %v165
      %vm179 = vcmp.lt.f32.partialorder %v178, 0.0004427343
      %v180 = vsel %vm179, %v177, %v174
      %v181 = vadd.f32 %v167, 1.0
      %v182 = vlog2.pop %v181
      %v183 = vmul.f32 %v182, 0.6931472
      %v184 = vmul.f32 -0.5, %v167
      %v185 = vadd.f32 %v184, 1.0
      %v186 = vmul.f32 %v185, %v167
      %v187 = vand.u32 2147483647, %v167
      %vm188 = vcmp.lt.f32.partialorder %v187, 0.0004427343
      %v189 = vsel %vm188, %v186, %v183
      %v190 = vadd.f32 %v169, 1.0
      %v191 = vlog2.pop %v190
      %v192 = vmul.f32 %v191, 0.6931472
      %v193 = vmul.f32 -0.5, %v169
      %v194 = vadd.f32 %v193, 1.0
      %v195 = vmul.f32 %v194, %v169
      %v196 = vand.u32 2147483647, %v169
      %vm197 = vcmp.lt.f32.partialorder %v196, 0.0004427343
      %v198 = vsel %vm197, %v195, %v192
      %v199 = vadd.f32 %v171, 1.0
      %v200 = vlog2.pop %v199
      %v201 = vmul.f32 %v200, 0.6931472
      %v202 = vmul.f32 -0.5, %v171
      %v203 = vadd.f32 %v202, 1.0
      %v204 = vmul.f32 %v203, %v171
      %v205 = vand.u32 2147483647, %v171
      %vm206 = vcmp.lt.f32.partialorder %v205, 0.0004427343
      %v207 = vsel %vm206, %v204, %v201
      %v208 = vadd.f32 %v152, %v180
      %v209 = vadd.f32 %v153, %v189
      %v210 = vadd.f32 %v154, %v198
      %v211 = vadd.f32 %v155, %v207
      %s212 = sld [smem:[#allocation2 + $0x3]]
      %v213 = vadd.f32 %v208, %v209
      %v214 = vadd.f32 %v213, %v210
      %v215 = vadd.f32 %v214, %v211
      %216 = vadd.xlane.f32.xlu0 %v215
      %v217 = vpop.xlane.xlu0 %216
      %v218 = vrot.slane %v217, 4
      %v219 = vadd.f32 %v217, %v218
      %v220 = vrot.slane %v219, 2
      %v221 = vadd.f32 %v219, %v220
      %v222 = vrot.slane %v221, 1
      %v223 = vadd.f32 %v221, %v222
      %s224 = vtos %v223
      %s225 = sadd.f32 %s212, %s224
      %s226 = scalar_lea.smem [#allocation2], 3
      %227 = sst [smem:[%s226]] %s225
    $region33: #{tpu_custom_call.1} parent=1 // pred_fallthru
      _
    // Predicated region
    $region34: #{tpu_custom_call.1} parent=1 // pred_check
      %p228 = pneg %p56
    $region35: #{tpu_custom_call.1} parent=1 // pred_check_branch
      %230 = sbr.rel (%p228) target = $region37
    $region36: #{tpu_custom_call.1} parent=1 // pred_region
      %s231 = sld [smem:[#allocation2]]
      %s232 = smul.f32 %s231, 0.00048828125
      %s233 = sld [smem:[#allocation2 + $0x1]]
      %s234 = smul.f32 %s233, 0.00048828125
      %s235 = ssub.f32 %s232, %s234
      %s236 = sld [smem:[#allocation2 + $0x2]]
      %s237 = smul.f32 %s236, 0.00048828125
      %s238 = sld [smem:[#allocation2 + $0x3]]
      %s239 = smul.f32 %s238, 0.00024414063
      %s240 = smul.f32 %s239, 0.1
      %s241 = smul.f32 %s237, %s235
      %s242 = ssub.f32 0.9, %s237
      %s243 = smul.f32 %s242, %s232
      %s244 = sadd.f32 %s243, %s240
      %s245 = sadd.f32 %s244, %s241
      %s246 = scalar_lea.smem [#allocation9], 0
      %247 = sst [smem:[%s246]] %s245
    $region37: #{tpu_custom_call.1} parent=1 // pred_fallthru
      _
    // Predicated region
    $region38: #{tpu_custom_call.1} parent=1 // pred_check
      _
    $region39: #{tpu_custom_call.1} parent=1 // pred_check_branch
      %249 = sbr.rel (0) target = $region41
    $region40: #{tpu_custom_call.1} parent=1 // pred_region
      %s251 = ssub.s32 16, 16
      %252 = vsyncadd [#allocation5], %s251
      %255 = dma.smem_to_hbm [#allocation9], 16, %s3, [#allocation5]
    $region41: #{tpu_custom_call.1} parent=1 // pred_fallthru
      _
    // Predicated region
    $region42: #{tpu_custom_call.1} parent=1 // pred_check
      _
    $region43: #{tpu_custom_call.1} parent=1 // pred_check_branch
      %257 = sbr.rel (0) target = $region45
    $region44: #{tpu_custom_call.1} parent=1 // pred_region
      %258 = dma.done [#allocation5], 16
    $region45: #{tpu_custom_call.1} parent=1 // pred_fallthru
      _
    %259 = sfence
    %260 = vsyncpa [#allocation4], 1
    %261 = vsyncpa [#allocation7], 1
    %262 = vsyncpa [#allocation5], 1

</llo_original>
